<compile_context>
chip_gen: v7x
topology: tpu7x:2x2x1
jax: 0.10.0
libtpu: 0.0.40
codegen_flags: <defaults>
</compile_context>

<pallas_src>
import math
import functools

import jax
import jax.numpy as jnp
from jax.experimental import pallas as pl
from jax.experimental.pallas import tpu as pltpu


# ----------------------------------------------------------------------------
# Helpers
# ----------------------------------------------------------------------------
def _round_up(x: int, m: int) -> int:
    return ((x + m - 1) // m) * m


_N_TILE_CANDIDATES = (1024, 512, 256, 128)
_K_TILE_CANDIDATES = (1024, 512, 256, 128)
_M_TILE_CANDIDATES = (512, 256, 128, 64, 32, 16, 8)


def _pick_tile(padded_extent: int, candidates) -> int:
    """Largest candidate tile whose padding waste is <= 12.5% of the padded size."""
    for c in candidates:
        total = _round_up(padded_extent, c)
        if total - padded_extent <= total // 8:
            return c
    return candidates[-1]


def _largest_divisor_tile(extent: int, candidates) -> int:
    for c in candidates:
        if extent % c == 0:
            return c
    return candidates[-1]


def _device_vmem_limit_bytes() -> int:
    """Generation-aware scoped-VMEM budget (headroom left for Mosaic scratch)."""
    cap = None
    try:
        cap = getattr(pltpu.get_tpu_info(), "vmem_capacity_bytes", None)
    except Exception:
        cap = None
    if not cap:
        try:
            kind = jax.devices()[0].device_kind.lower()
        except Exception:
            kind = ""
        is_v7 = ("v7" in kind) or ("7x" in kind)
        cap = (64 if is_v7 else 128) * 1024 * 1024
    # Leave ~16 MiB headroom; never ask for more than 96 MiB or less than 32 MiB.
    return int(min(max(cap - 16 * 1024 * 1024, 32 * 1024 * 1024), 96 * 1024 * 1024))


# ----------------------------------------------------------------------------
# Kernels
# ----------------------------------------------------------------------------
def _make_linear_kernel(has_bias: bool, use_scratch: bool):
    """Tiled matmul kernel; grid = (M//tm, N//tn, K//tk) with K innermost.

    Weight arrives pre-transposed (K, N), so the contraction is a plain
    (tm,tk) @ (tk,tn) dot (no in-kernel transposes). The accumulator — the
    resident f32 output block, or a f32 VMEM scratch for narrow output
    dtypes — is initialized with the broadcast bias at k == 0.
    """

    def kernel(*refs):
        if has_bias:
            if use_scratch:
                x_ref, w_ref, b_ref, o_ref, acc_ref = refs
            else:
                x_ref, w_ref, b_ref, o_ref = refs
                acc_ref = o_ref
        else:
            b_ref = None
            if use_scratch:
                x_ref, w_ref, o_ref, acc_ref = refs
            else:
                x_ref, w_ref, o_ref = refs
                acc_ref = o_ref

        k = pl.program_id(2)

        @pl.when(k == 0)
        def _init():
            if has_bias:
                acc_ref[...] = jnp.broadcast_to(
                    b_ref[...].astype(acc_ref.dtype), acc_ref.shape
                )
            else:
                acc_ref[...] = jnp.zeros_like(acc_ref)

        acc_ref[...] += jnp.dot(
            x_ref[...], w_ref[...], preferred_element_type=jnp.float32
        ).astype(acc_ref.dtype)

        if use_scratch:
            @pl.when(k == pl.num_programs(2) - 1)
            def _finalize():
                o_ref[...] = acc_ref[...].astype(o_ref.dtype)

    return kernel


# ----------------------------------------------------------------------------
# One-time parameter preparation (keep OUT of the per-step hot path)
# ----------------------------------------------------------------------------
def prepare_linear_params(weight, bias=None):
    """Transpose + pad the PyTorch-layout weight once.

    weight: (out_features, in_features)   (torch.nn.Linear layout)
    bias:   (out_features,) or None
    Returns (w_t, bias2d): contraction-major weight (k_pad, n_pad) and a
    (1, n_pad) bias (or None), zero-padded to tile-aligned sizes.
    """
    out_features, in_features = weight.shape
    n128 = _round_up(out_features, 128)
    k128 = _round_up(in_features, 128)
    n_pad = _round_up(n128, _pick_tile(n128, _N_TILE_CANDIDATES))
    k_pad = _round_up(k128, _pick_tile(k128, _K_TILE_CANDIDATES))

    w_t = jnp.asarray(weight).T  # (in_features, out_features): contraction-major
    if (k_pad, n_pad) != w_t.shape:
        w_t = jnp.pad(w_t, ((0, k_pad - in_features), (0, n_pad - out_features)))

    bias2d = None
    if bias is not None:
        bias2d = jnp.asarray(bias).reshape(1, out_features)
        if n_pad != out_features:
            bias2d = jnp.pad(bias2d, ((0, 0), (0, n_pad - out_features)))
    return w_t, bias2d


# ----------------------------------------------------------------------------
# Forward
# ----------------------------------------------------------------------------
@functools.partial(jax.jit, static_argnames=("out_features",))
def linear_apply(x, w_t, bias2d=None, *, out_features):
    """y = x @ W.T + b with W given pre-transposed/padded as w_t = (k_pad, n_pad)."""
    *lead, in_features = x.shape
    k_pad, n_pad = w_t.shape
    m = math.prod(lead) if lead else 1
    x2d = x.reshape(m, in_features)

    out_dtype = x.dtype
    has_bias = bias2d is not None
    use_scratch = out_dtype != jnp.float32

    # ---- tile selection -----------------------------------------------------
    tn = _largest_divisor_tile(n_pad, _N_TILE_CANDIDATES)
    tk = _largest_divisor_tile(k_pad, _K_TILE_CANDIDATES)
    m8 = _round_up(m, 8)
    tm = _pick_tile(m8, _M_TILE_CANDIDATES)
    m_pad = _round_up(m8, tm)

    # Keep >= 2 parallel (i, j) blocks so the 2nd TensorCore on v7x has work.
    while (m_pad // tm) * (n_pad // tn) < 2:
        if tm > 8:
            tm //= 2
        elif tn > 128:
            tn //= 2
        else:
            break

    # ---- generation-aware VMEM budget + defensive shrink ---------------------
    vmem_limit = _device_vmem_limit_bytes()

    def _vmem_estimate(tm_, tn_, tk_):
        est = 2 * (tm_ * tk_ * x.dtype.itemsize
                   + tk_ * tn_ * w_t.dtype.itemsize
                   + tm_ * tn_ * jnp.dtype(out_dtype).itemsize)
        if use_scratch:
            est += tm_ * tn_ * 4
        if has_bias:
            est += 2 * tn_ * bias2d.dtype.itemsize
        return est

    while _vmem_estimate(tm, tn, tk) > (3 * vmem_limit) // 4 and tk > 128:
        tk //= 2
    while _vmem_estimate(tm, tn, tk) > (3 * vmem_limit) // 4 and tn > 128:
        tn //= 2

    # ---- pad activations (skip when aligned; zero-padding K is exact) -------
    if (m_pad != m) or (k_pad != in_features):
        x2d = jnp.pad(x2d, ((0, m_pad - m), (0, k_pad - in_features)))

    grid = (m_pad // tm, n_pad // tn, k_pad // tk)

    in_specs = [
        pl.BlockSpec((tm, tk), lambda i, j, k: (i, k)),
        pl.BlockSpec((tk, tn), lambda i, j, k: (k, j)),
    ]
    operands = [x2d, w_t]
    if has_bias:
        in_specs.append(pl.BlockSpec((1, tn), lambda i, j, k: (0, j)))
        operands.append(bias2d)
    out_spec = pl.BlockSpec((tm, tn), lambda i, j, k: (i, j))
    scratch_shapes = [pltpu.VMEM((tm, tn), jnp.float32)] if use_scratch else []

    cost = pl.CostEstimate(
        flops=2 * m_pad * n_pad * k_pad,
        transcendentals=0,
        bytes_accessed=(m_pad * k_pad * x.dtype.itemsize
                        + k_pad * n_pad * w_t.dtype.itemsize
                        + m_pad * n_pad * jnp.dtype(out_dtype).itemsize
                        + (n_pad * bias2d.dtype.itemsize if has_bias else 0)),
    )

    out_p = pl.pallas_call(
        _make_linear_kernel(has_bias, use_scratch),
        out_shape=jax.ShapeDtypeStruct((m_pad, n_pad), out_dtype),
        grid_spec=pltpu.PrefetchScalarGridSpec(
            num_scalar_prefetch=0,
            grid=grid,
            in_specs=in_specs,
            out_specs=out_spec,
            scratch_shapes=scratch_shapes,
        ),
        compiler_params=pltpu.CompilerParams(
            dimension_semantics=("parallel", "parallel", "arbitrary"),
            vmem_limit_bytes=vmem_limit,
        ),
        cost_estimate=cost,
    )(*operands)

    out2d = out_p
    if (m_pad != m) or (n_pad != out_features):
        out2d = out2d[:m, :out_features]
    return out2d.reshape(*lead, out_features)


def linear_forward(x, weight, bias=None):
    """Drop-in forward matching torch.nn.Linear: weight (out, in), bias (out,).

    Convenience path: does the one-time weight transpose/pad per call. For
    repeated calls, run `prepare_linear_params` once and call `linear_apply`.
    """
    out_features = weight.shape[0]
    w_t, bias2d = prepare_linear_params(weight, bias)
    return linear_apply(x, w_t, bias2d, out_features=out_features)


def init_linear_params(key, in_features, out_features, bias=True):
    """Deterministic init mirroring the PyTorch module:
    weight, bias ~ U(-1/sqrt(in_features), +1/sqrt(in_features))."""
    norm = math.sqrt(1.0 / in_features)
    kw, kb = jax.random.split(key)
    weight = (2.0 * jax.random.uniform(kw, (out_features, in_features),
                                       dtype=jnp.float32) - 1.0) * norm
    b = None
    if bias:
        b = (2.0 * jax.random.uniform(kb, (out_features,),
                                      dtype=jnp.float32) - 1.0) * norm
    return weight, b


if __name__ == "__main__":
    key = jax.random.PRNGKey(0)
    k_x, k_p, k_x2, k_p2, k_x3 = jax.random.split(key, 5)

    # --- test 1: small f32 with bias (direct-accumulate-into-output path) ----
    batch, seq, in_f, out_f = 2, 8, 32, 64
    x = jax.random.normal(k_x, (batch, seq, in_f), dtype=jnp.float32)
    weight, bias = init_linear_params(k_p, in_f, out_f, bias=True)

    y = linear_forward(x, weight, bias)
    jax.block_until_ready(y)
    y_ref = jnp.einsum("oi,bsi->bso", weight, x) + bias
    assert y.shape == (batch, seq, out_f)
    assert jnp.allclose(y, y_ref, atol=1e-5, rtol=1e-5)

    # no-bias path (bias row never DMA'd)
    y_nb = linear_forward(x, weight, None)
    jax.block_until_ready(y_nb)
    assert jnp.allclose(y_nb, jnp.einsum("oi,bsi->bso", weight, x),
                        atol=1e-5, rtol=1e-5)

    # --- test 2: ragged M, unaligned N/K, multiple K steps, prepared weights -
    batch2, seq2, in_f2, out_f2 = 3, 35, 288, 200
    x2 = jax.random.normal(k_x2, (batch2, seq2, in_f2), dtype=jnp.float32)
    w2, b2 = init_linear_params(k_p2, in_f2, out_f2, bias=True)
    w2_t, b2_2d = prepare_linear_params(w2, b2)   # one-time prep, outside hot path
    y2 = linear_apply(x2, w2_t, b2_2d, out_features=out_f2)
    jax.block_until_ready(y2)
    y2_ref = jnp.einsum("oi,bsi->bso", w2, x2) + b2
    assert y2.shape == (batch2, seq2, out_f2)
    assert jnp.allclose(y2, y2_ref, atol=1e-4, rtol=1e-4)

    # --- test 3: bf16 inputs (f32 VMEM scratch accumulator path) -------------
    x3 = jax.random.normal(k_x3, (4, 16, 128), dtype=jnp.float32).astype(jnp.bfloat16)
    w3, b3 = init_linear_params(k_p, 128, 256, bias=True)
    w3 = w3.astype(jnp.bfloat16)
    b3 = b3.astype(jnp.bfloat16)
    y3 = linear_forward(x3, w3, b3)
    jax.block_until_ready(y3)
    y3_ref = (jnp.einsum("oi,bsi->bso", w3.astype(jnp.float32),
                         x3.astype(jnp.float32)) + b3.astype(jnp.float32))
    assert y3.dtype == jnp.bfloat16
    assert jnp.allclose(y3.astype(jnp.float32), y3_ref, atol=2e-2, rtol=2e-2)

    print("KERNEL_OK")
</pallas_src>

<mosaic_0001>
module attributes {stable_mosaic.version = 11 : i64} {
  func.func @kernel(%arg0: i32, %arg1: i32, %arg2: i32, %arg3: memref<8x128xf32, #tpu.memory_space<vmem>>, %arg4: memref<128x128xf32, #tpu.memory_space<vmem>>, %arg5: memref<1x128xf32, #tpu.memory_space<vmem>>, %arg6: memref<8x128xf32, #tpu.memory_space<vmem>>) attributes {dimension_semantics = [#tpu.dimension_semantics<parallel>, #tpu.dimension_semantics<parallel>, #tpu.dimension_semantics<arbitrary>], iteration_bounds = array<i64: 2, 1, 1>, scalar_prefetch = 0 : i64, scratch_operands = 0 : i64, tpu.core_type = #tpu.core_type<tc>, window_params = [{transform_indices = @transform_0, window_bounds = array<i64: 8, 128>}, {transform_indices = @transform_1, window_bounds = array<i64: 128, 128>}, {transform_indices = @transform_2, window_bounds = array<i64: 1, 128>}, {transform_indices = @transform_3, window_bounds = array<i64: 8, 128>}]} {
    %c0_i32 = arith.constant 0 : i32
    %0 = arith.cmpi eq, %arg2, %c0_i32 : i32
    %1 = arith.extui %0 : i1 to i32
    %c0_i32_0 = arith.constant 0 : i32
    %2 = arith.cmpi ne, %1, %c0_i32_0 : i32
    scf.if %2 {
      %c0_8 = arith.constant 0 : index
      %c0_9 = arith.constant 0 : index
      %9 = vector.load %arg5[%c0_8, %c0_9] : memref<1x128xf32, #tpu.memory_space<vmem>>, vector<1x128xf32>
      %10 = vector.shape_cast %9 : vector<1x128xf32> to vector<1x128xf32>
      %11 = vector.broadcast %10 : vector<1x128xf32> to vector<8x128xf32>
      %c0_10 = arith.constant 0 : index
      %c0_11 = arith.constant 0 : index
      %12 = vector.load %arg6[%c0_10, %c0_11] : memref<8x128xf32, #tpu.memory_space<vmem>>, vector<8x128xf32>
      tpu.vector_store %arg6[%c0_10, %c0_11], %11 {strides = array<i32>} : memref<8x128xf32, #tpu.memory_space<vmem>>, vector<8x128xf32>,
    } else {
    }
    %c0 = arith.constant 0 : index
    %c0_1 = arith.constant 0 : index
    %3 = vector.load %arg6[%c0, %c0_1] : memref<8x128xf32, #tpu.memory_space<vmem>>, vector<8x128xf32>
    %c0_2 = arith.constant 0 : index
    %c0_3 = arith.constant 0 : index
    %4 = vector.load %arg3[%c0_2, %c0_3] : memref<8x128xf32, #tpu.memory_space<vmem>>, vector<8x128xf32>
    %c0_4 = arith.constant 0 : index
    %c0_5 = arith.constant 0 : index
    %5 = vector.load %arg4[%c0_4, %c0_5] : memref<128x128xf32, #tpu.memory_space<vmem>>, vector<128x128xf32>
    %cst = arith.constant dense<0.000000e+00> : vector<8x128xf32>
    %6 = tpu.matmul %4, %5, %cst {dimension_numbers = #tpu.dot_dimension_numbers<[1], [0], [0], [1], [0, 0, 1, 1], [], []>} : vector<8x128xf32>, vector<128x128xf32>, vector<8x128xf32> -> vector<8x128xf32>
    %7 = arith.addf %3, %6 : vector<8x128xf32>
    %c0_6 = arith.constant 0 : index
    %c0_7 = arith.constant 0 : index
    %8 = vector.load %arg6[%c0_6, %c0_7] : memref<8x128xf32, #tpu.memory_space<vmem>>, vector<8x128xf32>
    tpu.vector_store %arg6[%c0_6, %c0_7], %7 {strides = array<i32>} : memref<8x128xf32, #tpu.memory_space<vmem>>, vector<8x128xf32>,
    return
  }
  func.func @transform_0(%arg0: i32, %arg1: i32, %arg2: i32) -> (i32, i32) {
    %c0_i32 = arith.constant 0 : i32
    return %arg0, %arg2 : i32, i32
  }
  func.func @transform_1(%arg0: i32, %arg1: i32, %arg2: i32) -> (i32, i32) {
    %c0_i32 = arith.constant 0 : i32
    return %arg2, %arg1 : i32, i32
  }
  func.func @transform_2(%arg0: i32, %arg1: i32, %arg2: i32) -> (i32, i32) {
    %c0_i32 = arith.constant 0 : i32
    %c0_i32_0 = arith.constant 0 : i32
    return %c0_i32, %arg1 : i32, i32
  }
  func.func @transform_3(%arg0: i32, %arg1: i32, %arg2: i32) -> (i32, i32) {
    %c0_i32 = arith.constant 0 : i32
    return %arg0, %arg1 : i32, i32
  }
}

</mosaic_0001>

<llo_original>
// kernel: linear_apply.1
$region0: #{linear_apply.1}
  #allocation0 [shape = 'u32[]', space=smem, size = 0x4, offset = 0x4, fixed_abs, tag = 'smem constant byte address 0x4 - core index']
  #allocation1 [shape = 'u32[144,128]{1,0:T(1,128)}', space=vmem, size = 0x12000, scoped, tag = 'internal scratch']
  %s0 = inlined_call_operand.hbm [shape: f32[16,128], index: 0, kind: input, shape index: {}]
  %s1 = inlined_call_operand.hbm [shape: f32[128,128], index: 1, kind: input, shape index: {}]
  %s2 = inlined_call_operand.hbm [shape: f32[1,128], index: 2, kind: input, shape index: {}]
  %s3 = inlined_call_operand.hbm [shape: f32[16,128], index: 3, kind: output, shape index: {}]
  %s4 = sld [smem:[#allocation0]]
  $region61: #{linear_apply.1} parent=0
    _
  %s6 = ssub.s32 1, %s4
  %s7 = scalar_select 0, %s6, %s4
  $region1: #{linear_apply.1} parent=0
    #allocation2 [shape = 'u8[8192]{0}', space=vmem, size = 0x2000, scoped, tag = 'input window, operand 0']
    #allocation3 [shape = 's32[2]{0}', space=sflag, size = 0x8, scoped, tag = 'scoped memory for linear_apply.1']
    #allocation4 [shape = 's32[2]{0}', space=sflag, size = 0x8, scoped, tag = 'scoped memory for linear_apply.1']
    #allocation5 [shape = 'u8[65536]{0}', space=vmem, size = 0x10000, scoped, tag = 'input window, operand 1, single buffered']
    #allocation6 [shape = 's32[1]{0}', space=sflag, size = 0x4, scoped, tag = 'scoped memory for linear_apply.1']
    #allocation7 [shape = 'u8[512]{0}', space=vmem, size = 0x400, scoped, tag = 'input window, operand 2, single buffered']
    #allocation8 [shape = 'u8[8192]{0}', space=vmem, size = 0x2000, scoped, tag = 'output window, operand 0']
    %8 = vsyncpa [#allocation3], 0
    %s9 = scalar_lea.sflag [#allocation3], 1
    %10 = vsyncpa %s9, 0
    %11 = vsyncpa [#allocation6], 0
    %12 = vsyncpa [#allocation4], 0
    %s13 = scalar_lea.sflag [#allocation4], 1
    %14 = vsyncpa %s13, 0
    loop: start=0, step=1, limit=4
    $region2: #{linear_apply.1} parent=1 // loop_pre_header
      _
    $region3: #{linear_apply.1} parent=1 // loop_header
      %s16 = sphi 0, %s20
      %p17 = scmp.ge.s32.totalorder %s16, 4
      %s23 = sphi 0, %s42
      %s24 = sphi 0, %s38
      %s25 = sphi 0, %s34
      %s26 = sphi 0, %s23
      %s27 = sphi 0, %s24
      %s28 = sphi 0, %s25
      %s29 = sphi 0, %s26
      %s30 = sphi 0, %s27
      %s31 = sphi 0, %s28
      %s47 = sphi 0, %s49
      %s50 = sphi 0, %s47
      %s51 = sphi 0, %s50
      %s67 = sphi 0, %s51
      %s75 = sphi 0, %s77
      %s78 = sphi 0, %s75
      %s79 = sphi 0, %s78
      %s95 = sphi 0, %s79
      %s101 = sphi 0, %s103
      %s104 = sphi 0, %s101
      %s105 = sphi 0, %s104
      %s121 = sphi 0, %s105
      %s129 = sphi 0, %s131
      %s132 = sphi 0, %s129
      %s133 = sphi 0, %s132
      %s149 = sphi 0, %s133
    $region4: #{linear_apply.1} parent=1 // loop_header_branch
      %19 = sbr.rel (%p17) target = $region8
    $region5: #{linear_apply.1} parent=1 // loop_body
      %s21 = ssub.s32 %s16, 1
      %s22 = ssub.s32 %s16, 2
      %s32 = sadd.s32 1, %s25
      %p33 = scmp.ge.s32.totalorder %s32, 1
      %s34 = scalar_select %p33, 0, %s32
      %s35 = sadd.s32 1, %s24
      %s36 = scalar_select %p33, %s35, %s24
      %p37 = scmp.ge.s32.totalorder %s36, 1
      %s38 = scalar_select %p37, 0, %s36
      %s39 = sadd.s32 1, %s23
      %s40 = scalar_select %p37, %s39, %s23
      %p41 = scmp.ge.s32.totalorder %s40, 2
      %s42 = scalar_select %p41, 0, %s40
      %s43 = ssub.s32 %s23, %s42
      %s44 = ssub.s32 %s25, %s34
      %s45 = sor.u32 %s43, %s44
      %p46 = scmp.eq.s32.totalorder %s45, 0
      %s48 = sadd.s32 %s47, 1
      %s49 = scalar_select %p46, %s47, %s48
      %p52 = pneg %p46
      %p53 = scmp.eq.s32.totalorder %s16, 1
      %p54 = por %p52, %p53
      %p55 = scmp.ne.s32.totalorder %s47, %s50
      %p56 = scmp.eq.s32.totalorder %s16, 0
      %p57 = por %p55, %p56
      %p58 = scmp.ne.s32.totalorder %s47, %s50
      %p59 = scmp.eq.s32.totalorder %s21, 1
      %p60 = por %p58, %p59
      %p61 = scmp.ne.s32.totalorder %s50, %s51
      %p62 = scmp.eq.s32.totalorder %s21, 0
      %p63 = por %p61, %p62
      %p64 = scmp.ne.s32.totalorder %s50, %s51
      %p65 = scmp.eq.s32.totalorder %s22, 1
      %p66 = por %p64, %p65
      %p68 = scmp.ne.s32.totalorder %s51, %s67
      %p69 = scmp.eq.s32.totalorder %s22, 0
      %p70 = por %p68, %p69
      %s71 = ssub.s32 %s25, %s34
      %s72 = ssub.s32 %s24, %s38
      %s73 = sor.u32 %s71, %s72
      %p74 = scmp.eq.s32.totalorder %s73, 0
      %s76 = sadd.s32 %s75, 1
      %s77 = scalar_select %p74, %s75, %s76
      %p80 = pneg %p74
      %p81 = scmp.eq.s32.totalorder %s16, 1
      %p82 = por %p80, %p81
      %p83 = scmp.ne.s32.totalorder %s75, %s78
      %p84 = scmp.eq.s32.totalorder %s16, 0
      %p85 = por %p83, %p84
      %p86 = scmp.ne.s32.totalorder %s75, %s78
      %p87 = scmp.eq.s32.totalorder %s21, 1
      %p88 = por %p86, %p87
      %p89 = scmp.ne.s32.totalorder %s78, %s79
      %p90 = scmp.eq.s32.totalorder %s21, 0
      %p91 = por %p89, %p90
      %p92 = scmp.ne.s32.totalorder %s78, %s79
      %p93 = scmp.eq.s32.totalorder %s22, 1
      %p94 = por %p92, %p93
      %p96 = scmp.ne.s32.totalorder %s79, %s95
      %p97 = scmp.eq.s32.totalorder %s22, 0
      %p98 = por %p96, %p97
      %s99 = ssub.s32 %s24, %s38
      %p100 = scmp.eq.s32.totalorder %s99, 0
      %s102 = sadd.s32 %s101, 1
      %s103 = scalar_select %p100, %s101, %s102
      %p106 = pneg %p100
      %p107 = scmp.eq.s32.totalorder %s16, 1
      %p108 = por %p106, %p107
      %p109 = scmp.ne.s32.totalorder %s101, %s104
      %p110 = scmp.eq.s32.totalorder %s16, 0
      %p111 = por %p109, %p110
      %p112 = scmp.ne.s32.totalorder %s101, %s104
      %p113 = scmp.eq.s32.totalorder %s21, 1
      %p114 = por %p112, %p113
      %p115 = scmp.ne.s32.totalorder %s104, %s105
      %p116 = scmp.eq.s32.totalorder %s21, 0
      %p117 = por %p115, %p116
      %p118 = scmp.ne.s32.totalorder %s104, %s105
      %p119 = scmp.eq.s32.totalorder %s22, 1
      %p120 = por %p118, %p119
      %p122 = scmp.ne.s32.totalorder %s105, %s121
      %p123 = scmp.eq.s32.totalorder %s22, 0
      %p124 = por %p122, %p123
      %s125 = ssub.s32 %s23, %s42
      %s126 = ssub.s32 %s24, %s38
      %s127 = sor.u32 %s125, %s126
      %p128 = scmp.eq.s32.totalorder %s127, 0
      %s130 = sadd.s32 %s129, 1
      %s131 = scalar_select %p128, %s129, %s130
      %p134 = pneg %p128
      %p135 = scmp.eq.s32.totalorder %s16, 1
      %p136 = por %p134, %p135
      %p137 = scmp.ne.s32.totalorder %s129, %s132
      %p138 = scmp.eq.s32.totalorder %s16, 0
      %p139 = por %p137, %p138
      %p140 = scmp.ne.s32.totalorder %s129, %s132
      %p141 = scmp.eq.s32.totalorder %s21, 1
      %p142 = por %p140, %p141
      %p143 = scmp.ne.s32.totalorder %s132, %s133
      %p144 = scmp.eq.s32.totalorder %s21, 0
      %p145 = por %p143, %p144
      %p146 = scmp.ne.s32.totalorder %s132, %s133
      %p147 = scmp.eq.s32.totalorder %s22, 1
      %p148 = por %p146, %p147
      %p150 = scmp.ne.s32.totalorder %s133, %s149
      %p151 = scmp.eq.s32.totalorder %s22, 0
      %p152 = por %p150, %p151
      %p153 = scmp.le.s32.totalorder 1, %s16
      %p154 = scmp.lt.s32.totalorder %s16, 3
      %p155 = pnand %p153, %p154
      %p156 = pneg %p155
      // Predicated region
      $region9: #{linear_apply.1} parent=5 // pred_check
        _
      $region10: #{linear_apply.1} parent=5 // pred_check_branch
        %158 = sbr.rel (%p155) target = $region12
      $region11: #{linear_apply.1} parent=5 // pred_region
        %s159 = ssub.s32 %s16, 1
        // Predicated region
        $region13: #{linear_apply.1} parent=11 // pred_check
          %p160 = pneg %p91
        $region14: #{linear_apply.1} parent=11 // pred_check_branch
          %162 = sbr.rel (%p160) target = $region16
        $region15: #{linear_apply.1} parent=11 // pred_region
          %s163 = smul.u32 16, %s28
          %s165 = ssub.s32 2048, 2048
          %166 = vsyncadd [#allocation6], %s165
          %s167 = sadd.s32 %s27, %s163
          %s168 = smul.addr %s167, 128
          %s169 = scalar_lea.hbm %s1, %s168
          %s170 = sshll.u32 [#allocation5], 4
          %s171 = int_to_ptr.vmem [resolvable:$true] %s170
          %176 = dma.hbm_to_vmem [thread:$0]  %s169, 2048, %s171, [#allocation6], 128, 128, 8
        $region16: #{linear_apply.1} parent=11 // pred_fallthru
          _
        // Predicated region
        $region17: #{linear_apply.1} parent=11 // pred_check
          %p177 = pneg %p117
        $region18: #{linear_apply.1} parent=11 // pred_check_branch
          %179 = sbr.rel (%p177) target = $region20
        $region19: #{linear_apply.1} parent=11 // pred_region
          %s181 = ssub.s32 16, 16
          %182 = vsyncadd [#allocation6], %s181
          %s183 = smul.addr %s27, 16
          %s184 = scalar_lea.hbm %s2, %s183
          %s186 = sshll.u32 [#allocation7], 4
          %s187 = int_to_ptr.vmem [resolvable:$true] %s186
          %189 = dma.hbm_to_vmem [thread:$0]  %s184, 16, %s187, [#allocation6]
        $region20: #{linear_apply.1} parent=11 // pred_fallthru
          _
      $region12: #{linear_apply.1} parent=5 // pred_fallthru
        _
      %p190 = scmp.lt.s32.totalorder %s16, 2
      // Predicated region
      $region21: #{linear_apply.1} parent=5 // pred_check
        %p191 = pneg %p190
      $region22: #{linear_apply.1} parent=5 // pred_check_branch
        %193 = sbr.rel (%p191) target = $region24
      $region23: #{linear_apply.1} parent=5 // pred_region
        // Predicated region
        $region25: #{linear_apply.1} parent=23 // pred_check
          %p194 = pneg %p57
        $region26: #{linear_apply.1} parent=23 // pred_check_branch
          %196 = sbr.rel (%p194) target = $region28
        $region27: #{linear_apply.1} parent=23 // pred_region
          %s197 = sand.u32 %s47, 1
          %s198 = scalar_lea.sflag [#allocation3], %s197
          %s199 = sand.u32 %s47, 1
          %s200 = smul.addr %s199, 8
          %s201 = scalar_lea.vmem [#allocation2], %s200
          %s203 = ssub.s32 128, 128
          %204 = vsyncadd %s198, %s203
          %s205 = sadd.s32 %s25, %s23
          %s206 = smul.addr %s205, 128
          %s207 = scalar_lea.hbm %s0, %s206
          %s209 = sshll.u32 %s201, 4
          %s210 = int_to_ptr.vmem [resolvable:$true] %s209
          %212 = dma.hbm_to_vmem [thread:$0]  %s207, 128, %s210, %s198
        $region28: #{linear_apply.1} parent=23 // pred_fallthru
          _
      $region24: #{linear_apply.1} parent=5 // pred_fallthru
        _
      %p213 = scmp.le.s32.totalorder 1, %s16
      %p214 = scmp.lt.s32.totalorder %s16, 3
      %p215 = pnand %p213, %p214
      %p216 = pneg %p215
      // Predicated region
      $region29: #{linear_apply.1} parent=5 // pred_check
        _
      $region30: #{linear_apply.1} parent=5 // pred_check_branch
        %218 = sbr.rel (%p215) target = $region32
      $region31: #{linear_apply.1} parent=5 // pred_region
        %s219 = ssub.s32 %s16, 1
        %s220 = sand.u32 %s50, 1
        %s221 = scalar_lea.sflag [#allocation3], %s220
        %s222 = sand.u32 %s50, 1
        %s223 = smul.addr %s222, 8
        %s224 = scalar_lea.vmem [#allocation2], %s223
        // Predicated region
        $region33: #{linear_apply.1} parent=31 // pred_check
          %p225 = pneg %p63
        $region34: #{linear_apply.1} parent=31 // pred_check_branch
          %227 = sbr.rel (%p225) target = $region36
        $region35: #{linear_apply.1} parent=31 // pred_region
          %228 = dma.done %s221, 128
        $region36: #{linear_apply.1} parent=31 // pred_fallthru
          _
        // Predicated region
        $region37: #{linear_apply.1} parent=31 // pred_check
          %p229 = pneg %p91
        $region38: #{linear_apply.1} parent=31 // pred_check_branch
          %231 = sbr.rel (%p229) target = $region40
        $region39: #{linear_apply.1} parent=31 // pred_region
          %232 = dma.done [#allocation6], 2048
        $region40: #{linear_apply.1} parent=31 // pred_fallthru
          _
        // Predicated region
        $region41: #{linear_apply.1} parent=31 // pred_check
          %p233 = pneg %p117
        $region42: #{linear_apply.1} parent=31 // pred_check_branch
          %235 = sbr.rel (%p233) target = $region44
        $region43: #{linear_apply.1} parent=31 // pred_region
          %236 = dma.done [#allocation6], 16
        $region44: #{linear_apply.1} parent=31 // pred_fallthru
          _
        %s237 = sand.u32 %s50, 1
        %s238 = scalar_lea.sflag [#allocation3], %s237
        %s239 = sand.u32 %s50, 1
        %s240 = smul.addr %s239, 8
        %s241 = scalar_lea.vmem [#allocation2], %s240
        %p242 = pneg %p63
        %p243 = pneg %p60
        %p244 = pneg %p91
        %p245 = pneg %p88
        %p246 = pneg %p117
        %p247 = pneg %p114
        %p248 = pneg %p145
        %p249 = pneg %p142
        %s250 = sand.u32 %s132, 1
        %s251 = scalar_lea.sflag [#allocation4], %s250
        %s252 = sand.u32 %s132, 1
        %s253 = smul.addr %s252, 8
        %s254 = scalar_lea.vmem [#allocation8], %s253
        %s255 = smul.u32 16, %s28
        %p256 = scmp.eq.s32.totalorder %s28, 0
        // Predicated region
        $region45: #{linear_apply.1} parent=31 // pred_check
          %p257 = pneg %p256
        $region46: #{linear_apply.1} parent=31 // pred_check_branch
          %259 = sbr.rel (%p257) target = $region48
        $region47: #{linear_apply.1} parent=31 // pred_region
          %v260 = vld [vmem:[#allocation7] sm:$0x1]
          %v262 = vlaneseq
          %v263 = vshrl.u32 %v262, 7
          %v264 = vsub.s32 0, %v263
          %v265 = vrot.slane %v260, %v264
          %267 = vst [vmem:[%s254] sm:$0xff] %v265
        $region48: #{linear_apply.1} parent=31 // pred_fallthru
          _
        %v268 = vld [vmem:[%s254] sm:$0xff]
        %v269 = vld [vmem:[%s224] sm:$0xff]
        %v270 = vld [vmem:[#allocation5] sm:$0xff]
        %v271 = vld [vmem:[#allocation5 + $0x8] sm:$0xff]
        %v272 = vld [vmem:[#allocation5 + $0x10] sm:$0xff]
        %v273 = vld [vmem:[#allocation5 + $0x18] sm:$0xff]
        %v274 = vld [vmem:[#allocation5 + $0x20] sm:$0xff]
        %v275 = vld [vmem:[#allocation5 + $0x28] sm:$0xff]
        %v276 = vld [vmem:[#allocation5 + $0x30] sm:$0xff]
        %v277 = vld [vmem:[#allocation5 + $0x38] sm:$0xff]
        %v278 = vld [vmem:[#allocation5 + $0x40] sm:$0xff]
        %v279 = vld [vmem:[#allocation5 + $0x48] sm:$0xff]
        %v280 = vld [vmem:[#allocation5 + $0x50] sm:$0xff]
        %v281 = vld [vmem:[#allocation5 + $0x58] sm:$0xff]
        %v282 = vld [vmem:[#allocation5 + $0x60] sm:$0xff]
        %v283 = vld [vmem:[#allocation5 + $0x68] sm:$0xff]
        %v284 = vld [vmem:[#allocation5 + $0x70] sm:$0xff]
        %v285 = vld [vmem:[#allocation5 + $0x78] sm:$0xff]
        %286 = vmatprep.subr.mxu0 0.0
        %287 = vmatpush1.msra.mxu0 %v270
        %288 = vmatprep.subr.mxu0 0.0
        %289 = vmatpush1.msra.mxu0 %v271
        %290 = vmatprep.subr.mxu0 0.0
        %291 = vmatpush1.msra.mxu0 %v272
        %292 = vmatprep.subr.mxu0 0.0
        %293 = vmatpush1.msra.mxu0 %v273
        %294 = vmatprep.subr.mxu0 0.0
        %295 = vmatpush1.msra.mxu0 %v274
        %296 = vmatprep.subr.mxu0 0.0
        %297 = vmatpush1.msra.mxu0 %v275
        %298 = vmatprep.subr.mxu0 0.0
        %299 = vmatpush1.msra.mxu0 %v276
        %300 = vmatprep.subr.mxu0 0.0
        %301 = vmatpush1.msra.mxu0 %v277
        %302 = vmatprep.subr.mxu0 0.0
        %303 = vmatpush1.msra.mxu0 %v278
        %304 = vmatprep.subr.mxu0 0.0
        %305 = vmatpush1.msra.mxu0 %v279
        %306 = vmatprep.subr.mxu0 0.0
        %307 = vmatpush1.msra.mxu0 %v280
        %308 = vmatprep.subr.mxu0 0.0
        %309 = vmatpush1.msra.mxu0 %v281
        %310 = vmatprep.subr.mxu0 0.0
        %311 = vmatpush1.msra.mxu0 %v282
        %312 = vmatprep.subr.mxu0 0.0
        %313 = vmatpush1.msra.mxu0 %v283
        %314 = vmatprep.subr.mxu0 0.0
        %315 = vmatpush1.msra.mxu0 %v284
        %316 = vmatprep.subr.mxu0 0.0
        %317 = vmatpush1.msra.mxu0 %v285
        %318 = vmatprep.subr.mxu0 0.0
        %319 = vmatpush1.msra.mxu0 0.0
        %320 = vmatprep.subr.mxu0 0.0
        %321 = vmatpush1.msra.mxu0 0.0
        %322 = vmatprep.subr.mxu0 0.0
        %323 = vmatpush1.msra.mxu0 0.0
        %324 = vmatprep.subr.mxu0 0.0
        %325 = vmatpush1.msra.mxu0 0.0
        %326 = vmatprep.subr.mxu0 0.0
        %327 = vmatpush1.msra.mxu0 0.0
        %328 = vmatprep.subr.mxu0 0.0
        %329 = vmatpush1.msra.mxu0 0.0
        %330 = vmatprep.subr.mxu0 0.0
        %331 = vmatpush1.msra.mxu0 0.0
        %332 = vmatprep.subr.mxu0 0.0
        %333 = vmatpush1.msra.mxu0 0.0
        %334 = vmatprep.subr.mxu0 0.0
        %335 = vmatpush1.msra.mxu0 0.0
        %336 = vmatprep.subr.mxu0 0.0
        %337 = vmatpush1.msra.mxu0 0.0
        %338 = vmatprep.subr.mxu0 0.0
        %339 = vmatpush1.msra.mxu0 0.0
        %340 = vmatprep.subr.mxu0 0.0
        %341 = vmatpush1.msra.mxu0 0.0
        %342 = vmatprep.subr.mxu0 0.0
        %343 = vmatpush1.msra.mxu0 0.0
        %344 = vmatprep.subr.mxu0 0.0
        %345 = vmatpush1.msra.mxu0 0.0
        %346 = vmatprep.subr.mxu0 0.0
        %347 = vmatpush1.msra.mxu0 0.0
        %348 = vmatprep.subr.mxu0 0.0
        %349 = vmatpush1.msra.mxu0 0.0
        %350 = vmatprep.mubr.f32.mxu0 0.0
        %351 = vmatmul.mubr.f32.gmra.mrb[0].mxu0 %v269
        %v352 = vpop.f32.mrb[0].mxu0
        %v353 = vadd.f32 0.0, %v352
        %v354 = vpop.f32.mrb[0].mxu0
        %355 = vdwg.mxu0
        %v356 = vadd.f32 %v268, %v353
        %357 = vst [vmem:[%s254] sm:$0xff] %v356
        %s358 = sand.u32 %s132, 1
        %s359 = scalar_lea.sflag [#allocation4], %s358
        %s360 = sand.u32 %s132, 1
        %s361 = smul.addr %s360, 8
        %s362 = scalar_lea.vmem [#allocation8], %s361
        // Predicated region
        $region49: #{linear_apply.1} parent=31 // pred_check
          %p363 = pneg %p142
        $region50: #{linear_apply.1} parent=31 // pred_check_branch
          %365 = sbr.rel (%p363) target = $region52
        $region51: #{linear_apply.1} parent=31 // pred_region
          %s367 = ssub.s32 128, 128
          %368 = vsyncadd %s359, %s367
          %s369 = sadd.s32 %s27, %s26
          %s370 = smul.addr %s369, 128
          %s371 = scalar_lea.hbm %s3, %s370
          %s373 = sshll.u32 %s362, 4
          %s374 = int_to_ptr.vmem [resolvable:$true] %s373
          %376 = dma.vmem_to_hbm [thread:$0]  %s374, 128, %s371, %s359
        $region52: #{linear_apply.1} parent=31 // pred_fallthru
          _
      $region32: #{linear_apply.1} parent=5 // pred_fallthru
        _
      %p377 = scmp.le.s32.totalorder 2, %s16
      // Predicated region
      $region53: #{linear_apply.1} parent=5 // pred_check
        %p378 = pneg %p377
      $region54: #{linear_apply.1} parent=5 // pred_check_branch
        %380 = sbr.rel (%p378) target = $region56
      $region55: #{linear_apply.1} parent=5 // pred_region
        %s381 = ssub.s32 %s16, 2
        // Predicated region
        $region57: #{linear_apply.1} parent=55 // pred_check
          %p382 = pneg %p148
        $region58: #{linear_apply.1} parent=55 // pred_check_branch
          %384 = sbr.rel (%p382) target = $region60
        $region59: #{linear_apply.1} parent=55 // pred_region
          %s385 = sand.u32 %s133, 1
          %s386 = scalar_lea.sflag [#allocation4], %s385
          %s387 = sand.u32 %s133, 1
          %s388 = smul.addr %s387, 8
          %s389 = scalar_lea.vmem [#allocation8], %s388
          %390 = dma.done %s386, 128
        $region60: #{linear_apply.1} parent=55 // pred_fallthru
          _
      $region56: #{linear_apply.1} parent=5 // pred_fallthru
        _
    $region6: #{linear_apply.1} parent=1 // loop_footer
      %s20 = sadd.s32 1, %s16
    $region7: #{linear_apply.1} parent=1 // loop_footer_branch
      %15 = sbr.rel target = $region3
    $region8: #{linear_apply.1} parent=1 // loop_exit
      _
    %391 = vsyncpa [#allocation3], 1
    %s392 = scalar_lea.sflag [#allocation3], 1
    %393 = vsyncpa %s392, 1
    %394 = vsyncpa [#allocation6], 1
    %395 = vsyncpa [#allocation4], 1
    %s396 = scalar_lea.sflag [#allocation4], 1
    %397 = vsyncpa %s396, 1

</llo_original>
